<compile_context>
chip_gen: v5e
topology: v5e:2x2
jax: 0.10.0
libtpu: 0.0.40
codegen_flags: <defaults>
</compile_context>

<pallas_src>
import functools

import jax
import jax.numpy as jnp
from jax.experimental import pallas as pl
from jax.experimental.pallas import tpu as pltpu


def _round_up(x, m):
    return (x + m - 1) // m * m


def _patch_embed_kernel(p_ref, w_ref, b_ref, o_ref):
    # p_ref: (bm, K) patch tile, w_ref: (K, N) resident weight,
    # b_ref: (1, N) resident bias.  f32 accumulation on the MXU.
    acc = jnp.dot(p_ref[...], w_ref[...], preferred_element_type=jnp.float32)
    o_ref[...] = (acc + b_ref[...]).astype(o_ref.dtype)


def prepare_patch_embed_params(weight, bias, compute_dtype=jnp.bfloat16):
    """Per-model (not per-call) param prep.

    weight: (embed_dim, C, ph, pw) OIHW conv weight -> (K, N) matmul operand,
    flattened in (c, kh, kw) order, cast to the MXU compute dtype.
    bias: (embed_dim,) -> (1, N) float32 (added in f32 after accumulation).
    No padding: block shapes equal to the full K/N extents are legal and, for
    ViT-sized dims (K, N multiples of 128), already lane-dense.
    """
    embed_dim, C, ph, pw = weight.shape
    K = C * ph * pw
    w_mat = weight.reshape(embed_dim, K).T.astype(compute_dtype)   # (K, N)
    b_mat = bias.astype(jnp.float32).reshape(1, embed_dim)         # (1, N)
    return w_mat, b_mat


@functools.partial(jax.jit, static_argnames=("patch_size", "out_dtype", "bm"))
def patch_embed_forward(x, w_mat, b_mat, patch_size, out_dtype=None, bm=None):
    """x: (B, C, H, W) NCHW.  w_mat/b_mat: from prepare_patch_embed_params.

    Returns (B, num_patches, embed_dim), matching
    PatchEmbed(flatten=True, norm_layer=None): proj(x).flatten(2).transpose(1, 2).
    """
    B, C, H, W = x.shape
    ph, pw = patch_size
    assert H % ph == 0 and W % pw == 0
    gh, gw = H // ph, W // pw
    num_patches = gh * gw
    M = B * num_patches
    K, N = w_mat.shape
    assert K == C * ph * pw, "weight does not match (C, patch_size)"
    out_dtype = x.dtype if out_dtype is None else out_dtype

    # Patchify with (c, kh, kw) flatten order (matches OIHW conv weights).
    # Single fused transpose+cast producer (no pad pass); allow_input_fusion
    # below lets XLA fuse it into the pallas_call input pipeline when possible.
    patches = x.reshape(B, C, gh, ph, gw, pw)
    patches = patches.transpose(0, 2, 4, 1, 3, 5).reshape(M, K).astype(w_mat.dtype)

    # M-tile size.  Weight/bias are resident, so only patches/output tiles are
    # double-buffered; keep >=2 blocks when M allows (v7x megacore sharding).
    if bm is None:
        if M <= 512:
            bm = M
        else:
            bm = min(1024, _round_up(-(-M // 2), 8))
    grid_m = pl.cdiv(M, bm)

    in_bytes = patches.dtype.itemsize
    w_bytes = w_mat.dtype.itemsize
    out_bytes = jnp.dtype(out_dtype).itemsize
    # Double-buffered patches + output tiles, resident weight/bias, headroom.
    footprint = (2 * bm * (K * in_bytes + N * out_bytes)
                 + K * N * w_bytes + N * 4 + (4 << 20))
    vmem_limit = min(max(footprint, 32 << 20), 64 << 20)   # v7x-safe cap

    cost = pl.CostEstimate(
        flops=2 * M * K * N,
        transcendentals=0,
        bytes_accessed=(M * K * in_bytes + K * N * w_bytes + M * N * out_bytes),
    )

    out = pl.pallas_call(
        _patch_embed_kernel,
        out_shape=jax.ShapeDtypeStruct((M, N), out_dtype),
        grid_spec=pltpu.PrefetchScalarGridSpec(
            num_scalar_prefetch=0,
            grid=(grid_m,),
            in_specs=[
                pl.BlockSpec((bm, K), lambda i: (i, 0)),   # patches tile (pipelined)
                pl.BlockSpec((K, N), lambda i: (0, 0)),    # weight, VMEM-resident
                pl.BlockSpec((1, N), lambda i: (0, 0)),    # bias, VMEM-resident
            ],
            out_specs=pl.BlockSpec((bm, N), lambda i: (i, 0)),
        ),
        compiler_params=pltpu.CompilerParams(
            dimension_semantics=("parallel",),
            allow_input_fusion=[True, False, False],
            vmem_limit_bytes=vmem_limit,
        ),
        cost_estimate=cost,
    )(patches, w_mat, b_mat)

    return out.reshape(B, num_patches, N)


if __name__ == "__main__":
    # Small shapes consistent with the module: img=16, patch=4, in_chans=4,
    # embed_dim=32, batch=2.
    B, C, H, W = 2, 4, 16, 16
    ph, pw = 4, 4
    embed_dim = 32

    key = jax.random.PRNGKey(0)
    kx, kw, kb = jax.random.split(key, 3)
    x = jax.random.normal(kx, (B, C, H, W), dtype=jnp.float32)
    weight = jax.random.normal(kw, (embed_dim, C, ph, pw), dtype=jnp.float32) * 0.02
    bias = jax.random.normal(kb, (embed_dim,), dtype=jnp.float32) * 0.02

    # Reference: strided conv (NCHW) -> +bias -> flatten(2) -> transpose(1,2).
    ref = jax.lax.conv_general_dilated(
        x, weight, window_strides=(ph, pw), padding="VALID",
        dimension_numbers=("NCHW", "OIHW", "NCHW"),
        precision=jax.lax.Precision.HIGHEST)
    ref = ref + bias.reshape(1, embed_dim, 1, 1)
    ref = ref.reshape(B, embed_dim, -1).transpose(0, 2, 1)

    num_patches = (H // ph) * (W // pw)

    # f32 operands (validation path).
    w32, b32 = prepare_patch_embed_params(weight, bias, compute_dtype=jnp.float32)
    out32 = patch_embed_forward(x, w32, b32, (ph, pw))
    out32 = jax.block_until_ready(out32)
    assert out32.shape == (B, num_patches, embed_dim)
    assert jnp.allclose(out32, ref, atol=2e-3, rtol=1e-2)

    # bf16 operands, f32 accumulation, f32 output (production default).
    wbf, bbf = prepare_patch_embed_params(weight, bias, compute_dtype=jnp.bfloat16)
    outbf = patch_embed_forward(x, wbf, bbf, (ph, pw))
    outbf = jax.block_until_ready(outbf)
    assert outbf.shape == (B, num_patches, embed_dim)
    assert outbf.dtype == x.dtype
    assert jnp.allclose(outbf, ref, atol=1e-2, rtol=5e-2)

    # bf16 output (halves the dominant HBM write when downstream accepts bf16).
    outb16 = patch_embed_forward(x, wbf, bbf, (ph, pw), out_dtype=jnp.bfloat16)
    outb16 = jax.block_until_ready(outb16)
    assert outb16.shape == (B, num_patches, embed_dim)
    assert outb16.dtype == jnp.bfloat16
    assert jnp.allclose(outb16.astype(jnp.float32), ref, atol=2e-2, rtol=1e-1)

    print("KERNEL_OK")
</pallas_src>

<mosaic_0001>
module attributes {stable_mosaic.version = 11 : i64} {
  func.func @_patch_embed_kernel(%arg0: i32, %arg1: memref<32x64xf32, #tpu.memory_space<vmem>>, %arg2: memref<64x32xf32, #tpu.memory_space<vmem>>, %arg3: memref<1x32xf32, #tpu.memory_space<vmem>>, %arg4: memref<32x32xf32, #tpu.memory_space<vmem>>) attributes {dimension_semantics = [#tpu.dimension_semantics<parallel>], iteration_bounds = array<i64: 1>, scalar_prefetch = 0 : i64, scratch_operands = 0 : i64, tpu.core_type = #tpu.core_type<tc>, window_params = [{transform_indices = @transform_0, window_bounds = array<i64: 32, 64>}, {pipeline_mode = #tpu.pipeline_mode<synchronous>, transform_indices = @transform_1, window_bounds = array<i64: 64, 32>}, {pipeline_mode = #tpu.pipeline_mode<synchronous>, transform_indices = @transform_2, window_bounds = array<i64: 1, 32>}, {transform_indices = @transform_3, window_bounds = array<i64: 32, 32>}]} {
    %c0 = arith.constant 0 : index
    %c0_0 = arith.constant 0 : index
    %0 = vector.load %arg1[%c0, %c0_0] : memref<32x64xf32, #tpu.memory_space<vmem>>, vector<32x64xf32>
    %c0_1 = arith.constant 0 : index
    %c0_2 = arith.constant 0 : index
    %1 = vector.load %arg2[%c0_1, %c0_2] : memref<64x32xf32, #tpu.memory_space<vmem>>, vector<64x32xf32>
    %cst = arith.constant dense<0.000000e+00> : vector<32x32xf32>
    %2 = tpu.matmul %0, %1, %cst {dimension_numbers = #tpu.dot_dimension_numbers<[1], [0], [0], [1], [0, 0, 1, 1], [], []>} : vector<32x64xf32>, vector<64x32xf32>, vector<32x32xf32> -> vector<32x32xf32>
    %c0_3 = arith.constant 0 : index
    %c0_4 = arith.constant 0 : index
    %3 = vector.load %arg3[%c0_3, %c0_4] : memref<1x32xf32, #tpu.memory_space<vmem>>, vector<1x32xf32>
    %4 = vector.broadcast %3 : vector<1x32xf32> to vector<32x32xf32>
    %5 = arith.addf %2, %4 : vector<32x32xf32>
    %c0_5 = arith.constant 0 : index
    %c0_6 = arith.constant 0 : index
    %6 = vector.load %arg4[%c0_5, %c0_6] : memref<32x32xf32, #tpu.memory_space<vmem>>, vector<32x32xf32>
    tpu.vector_store %arg4[%c0_5, %c0_6], %5 {strides = array<i32>} : memref<32x32xf32, #tpu.memory_space<vmem>>, vector<32x32xf32>,
    return
  }
  func.func @transform_0(%arg0: i32) -> (i32, i32) {
    %c0_i32 = arith.constant 0 : i32
    %c0_i32_0 = arith.constant 0 : i32
    return %arg0, %c0_i32 : i32, i32
  }
  func.func @transform_1(%arg0: i32) -> (i32, i32) {
    %c0_i32 = arith.constant 0 : i32
    %c0_i32_0 = arith.constant 0 : i32
    %c0_i32_1 = arith.constant 0 : i32
    return %c0_i32, %c0_i32_0 : i32, i32
  }
  func.func @transform_2(%arg0: i32) -> (i32, i32) {
    %c0_i32 = arith.constant 0 : i32
    %c0_i32_0 = arith.constant 0 : i32
    %c0_i32_1 = arith.constant 0 : i32
    return %c0_i32, %c0_i32_0 : i32, i32
  }
  func.func @transform_3(%arg0: i32) -> (i32, i32) {
    %c0_i32 = arith.constant 0 : i32
    %c0_i32_0 = arith.constant 0 : i32
    return %arg0, %c0_i32 : i32, i32
  }
}

</mosaic_0001>

<llo_original>
// kernel: patch_embed_forward.1
$region0: #{patch_embed_forward.1}
  #allocation0 [shape = 'u32[]', space=smem, size = 0x4, offset = 0x4, fixed_abs, tag = 'smem constant byte address 0x4 - core index']
  #allocation1 [shape = 'u32[72,128]{1,0:T(1,128)}', space=vmem, size = 0x9000, scoped, tag = 'internal scratch']
  %s0 = inlined_call_operand.vmem [shape: f32[32,64], index: 0, kind: input, shape index: {}]
  %s1 = inlined_call_operand.vmem [shape: f32[64,32], index: 1, kind: input, shape index: {}]
  %s2 = inlined_call_operand.vmem [shape: f32[1,32], index: 2, kind: input, shape index: {}]
  %s3 = inlined_call_operand.hbm [shape: f32[32,32], index: 3, kind: output, shape index: {}]
  %s4 = sld [smem:[#allocation0]]
  $region22: #{patch_embed_forward.1} parent=0
    _
  %s6 = ssub.s32 1, %s4
  %s7 = scalar_select 0, %s6, %s4
  $region1: #{patch_embed_forward.1} parent=0
    #allocation2 [shape = 'u8[16384]{0}', space=vmem, size = 0x4000, scoped, tag = 'output window, operand 0, single buffered']
    #allocation3 [shape = 's32[1]{0}', space=sflag, size = 0x4, scoped, tag = 'scoped memory for patch_embed_forward.1']
    %8 = vsyncpa [#allocation3], 0
    // Predicated region
    $region2: #{patch_embed_forward.1} parent=1 // pred_check
      _
    $region3: #{patch_embed_forward.1} parent=1 // pred_check_branch
      %10 = sbr.rel (0) target = $region5
    $region4: #{patch_embed_forward.1} parent=1 // pred_region
      _
    $region5: #{patch_embed_forward.1} parent=1 // pred_fallthru
      _
    // Predicated region
    $region6: #{patch_embed_forward.1} parent=1 // pred_check
      _
    $region7: #{patch_embed_forward.1} parent=1 // pred_check_branch
      %12 = sbr.rel (0) target = $region9
    $region8: #{patch_embed_forward.1} parent=1 // pred_region
      _
    $region9: #{patch_embed_forward.1} parent=1 // pred_fallthru
      _
    // Predicated region
    $region10: #{patch_embed_forward.1} parent=1 // pred_check
      _
    $region11: #{patch_embed_forward.1} parent=1 // pred_check_branch
      %14 = sbr.rel (0) target = $region13
    $region12: #{patch_embed_forward.1} parent=1 // pred_region
      _
    $region13: #{patch_embed_forward.1} parent=1 // pred_fallthru
      _
    %v15 = vld [vmem:[%s0] sm:$0xff]
    %v16 = vld [vmem:[%s0 + $0x8] sm:$0xff]
    %v17 = vld [vmem:[%s0 + $0x10] sm:$0xff]
    %v18 = vld [vmem:[%s0 + $0x18] sm:$0xff]
    %v19 = vld [vmem:[%s1] sm:$0xff]
    %v20 = vld [vmem:[%s1 + $0x8] sm:$0xff]
    %v21 = vld [vmem:[%s1 + $0x10] sm:$0xff]
    %v22 = vld [vmem:[%s1 + $0x18] sm:$0xff]
    %v23 = vld [vmem:[%s1 + $0x20] sm:$0xff]
    %v24 = vld [vmem:[%s1 + $0x28] sm:$0xff]
    %v25 = vld [vmem:[%s1 + $0x30] sm:$0xff]
    %v26 = vld [vmem:[%s1 + $0x38] sm:$0xff]
    %v27 = vld [vmem:[%s2] sm:$0x1]
    %v29 = vperm.slane %v27, 0
    %vm31 = vcmask 523264
    %v33 = vsel %vm31, %v15, 0
    %v36 = vsel %vm31, %v16, 0
    %v39 = vsel %vm31, %v17, 0
    %v42 = vsel %vm31, %v18, 0
    %44 = vmatpush.msra.mxu0 0.0
    %45 = vmatpush.msra.mxu0 0.0
    %46 = vmatpush.msra.mxu0 0.0
    %47 = vmatpush.msra.mxu0 0.0
    %48 = vmatpush.msra.mxu0 0.0
    %49 = vmatpush.msra.mxu0 0.0
    %50 = vmatpush.msra.mxu0 0.0
    %51 = vmatpush.msra.mxu0 0.0
    %52 = vmatpush.msra.mxu0 %v26
    %53 = vmatpush.msra.mxu0 %v25
    %54 = vmatpush.msra.mxu0 %v24
    %55 = vmatpush.msra.mxu0 %v23
    %56 = vmatpush.msra.mxu0 %v22
    %57 = vmatpush.msra.mxu0 %v21
    %58 = vmatpush.msra.mxu0 %v20
    %59 = vmatpush.msra.mxu0 %v19
    %60 = vmatmul.f32.gmra.mxu0 %v33
    %v61 = vpop.f32.mrf.mxu0
    %v62 = vadd.f32 %v29, %v61
    %63 = vmatmul.f32.gmra.mxu0 %v36
    %v64 = vpop.f32.mrf.mxu0
    %v65 = vadd.f32 %v29, %v64
    %66 = vmatmul.f32.gmra.mxu0 %v39
    %v67 = vpop.f32.mrf.mxu0
    %v68 = vadd.f32 %v29, %v67
    %69 = vmatmul.f32.gmra.mxu0 %v42
    %v70 = vpop.f32.mrf.mxu0
    %v71 = vadd.f32 %v29, %v70
    %72 = vdwg.mxu0
    %vm73 = vcmask 261120
    %74 = vst.msk [vmem:[#allocation2] sm:$0xff] %vm73, %v62
    %75 = vst.msk [vmem:[#allocation2 + $0x8] sm:$0xff] %vm73, %v65
    %76 = vst.msk [vmem:[#allocation2 + $0x10] sm:$0xff] %vm73, %v68
    %77 = vst.msk [vmem:[#allocation2 + $0x18] sm:$0xff] %vm73, %v71
    // Predicated region
    $region14: #{patch_embed_forward.1} parent=1 // pred_check
      _
    $region15: #{patch_embed_forward.1} parent=1 // pred_check_branch
      %79 = sbr.rel (0) target = $region17
    $region16: #{patch_embed_forward.1} parent=1 // pred_region
      %81 = vsyncadd [#allocation3], 0
      %s82 = sshll.u32 [#allocation2], 4
      %s83 = int_to_ptr.vmem [resolvable:$true] %s82
      %s84 = sshll.u32 %s3, 4
      %s85 = int_to_ptr.hbm [resolvable:$true] %s84
      %90 = dma.vmem_to_hbm [thread:$0]  %s83, 512, %s85, [#allocation3], 128, 128, 8
    $region17: #{patch_embed_forward.1} parent=1 // pred_fallthru
      _
    // Predicated region
    $region18: #{patch_embed_forward.1} parent=1 // pred_check
      _
    $region19: #{patch_embed_forward.1} parent=1 // pred_check_branch
      %92 = sbr.rel (0) target = $region21
    $region20: #{patch_embed_forward.1} parent=1 // pred_region
      %94 = dma.done [#allocation3], 512
    $region21: #{patch_embed_forward.1} parent=1 // pred_fallthru
      _
    %95 = vsyncpa [#allocation3], 1

</llo_original>
